<compile_context>
chip_gen: v7x
topology: tpu7x:2x2x1
jax: 0.10.0
libtpu: 0.0.40
codegen_flags: <defaults>
</compile_context>

<pallas_src>
import functools

import jax
import jax.numpy as jnp
from jax import lax
from jax.experimental import pallas as pl
from jax.experimental.pallas import tpu as pltpu


_LANE = 128
_UNROLL_HIDDEN_MAX = 4   # unroll the hidden stack when it is this shallow


# ------------------------------ helpers ------------------------------------ #

def _round_up(x, m):
    return ((x + m - 1) // m) * m


def _pad2(a, rows, cols, dtype=None):
    """Zero-pad a 2-D array up to [rows, cols], optionally casting first."""
    a = jnp.asarray(a)
    if dtype is not None:
        a = a.astype(dtype)
    return jnp.pad(a, ((0, rows - a.shape[0]), (0, cols - a.shape[1])))


def _init_linear(key, fan_in, fan_out):
    """Deterministic init mimicking nn.Linear default (U[-1/sqrt(fan_in), +]).

    Weights stored as [in_features, out_features] so kernels compute
    y = x @ W + b.
    """
    kw, kb = jax.random.split(key)
    bound = 1.0 / (fan_in ** 0.5)
    w = jax.random.uniform(kw, (fan_in, fan_out), jnp.float32, -bound, bound)
    b = jax.random.uniform(kb, (fan_out,), jnp.float32, -bound, bound)
    return w, b


def _device_kind():
    try:
        return jax.devices()[0].device_kind.lower()
    except Exception:
        return ""


def _is_v5e():
    kind = _device_kind()
    return ("v5 lite" in kind) or ("v5e" in kind) or ("v5lite" in kind)


def _tpu_vmem_capacity_bytes():
    try:
        return int(pltpu.get_tpu_info().vmem_capacity_bytes)
    except Exception:
        # Fallback heuristic: v7x has 64 MiB per TC, earlier parts 128 MiB.
        if "v7" in _device_kind():
            return 64 * 1024 * 1024
        return 128 * 1024 * 1024


def _choose_tile_m(np_, itemsize, vmem_limit_bytes, vmem_capacity_bytes):
    """Pick a row-tile size: >=256 where possible, 512 on 128-MiB parts,
    bounded so a double-buffered (TILE_M, Np) S tile fits comfortably, and
    always a multiple of 128 that divides Np."""
    target = 512 if vmem_capacity_bytes >= 100 * 1024 * 1024 else 256
    cap = int(0.35 * vmem_limit_bytes) // max(1, 2 * np_ * itemsize)
    cap = max(_LANE, (cap // _LANE) * _LANE)
    target = min(target, cap)
    best = _LANE
    t = _LANE
    while t <= min(target, np_):
        if np_ % t == 0:
            best = t
        t += _LANE
    return best


# ------------------------------ kernels ------------------------------------- #

def _power_step_kernel(s_ref, p_prev_ref, w_ref, m_in_ref, p_out_ref, m_out_ref):
    """One propagation step of the folded first layer, per row tile.

    P_out = S_rowtile @ P_prev         (graph propagation recurrence)
    M_out = M_in + P_out @ W_j         (folded concat + first-Linear term)
    """
    f32 = jnp.float32
    p = jnp.dot(s_ref[...], p_prev_ref[...], preferred_element_type=f32)
    p_lo = p.astype(p_out_ref.dtype)                 # bf16 for the next MXU use
    p_out_ref[...] = p_lo
    m_out_ref[...] = m_in_ref[...] + jnp.dot(p_lo, w_ref[...],
                                             preferred_element_type=f32)


def _mlp_kernel(*refs, n_hidden, compute_dtype):
    """Row-tiled fused MLP: acc = S_rowtile @ M, then the whole dense stack."""
    f32 = jnp.float32
    s_ref, m_ref, b_in_ref = refs[0], refs[1], refs[2]
    idx = 3
    if n_hidden > 0:
        w_hid_ref, b_hid_ref = refs[idx], refs[idx + 1]
        idx += 2
    w_out_ref, b_out_ref, o_ref = refs[idx], refs[idx + 1], refs[idx + 2]

    # ---- folded first layer ----
    acc = jnp.dot(s_ref[...], m_ref[...], preferred_element_type=f32)
    h = jnp.maximum(acc + b_in_ref[...], 0.0)        # f32 VPU work

    # ---- hidden stack ----
    if n_hidden > 0:
        def layer(h_in, l):
            y = jnp.dot(h_in.astype(compute_dtype), w_hid_ref[l],
                        preferred_element_type=f32) + b_hid_ref[l]
            return jnp.maximum(y, 0.0)

        if n_hidden <= _UNROLL_HIDDEN_MAX:
            for l in range(n_hidden):
                h = layer(h, l)
        else:
            # Bounded live ranges for deep stacks; each iteration is still a
            # full-size MXU matmul.
            h = lax.fori_loop(0, n_hidden, lambda l, hh: layer(hh, l), h)

    # ---- output layer ----
    y = jnp.dot(h.astype(compute_dtype), w_out_ref[...],
                preferred_element_type=f32) + b_out_ref[...]
    o_ref[...] = jnp.maximum(y, 0.0).astype(o_ref.dtype)


# ------------------------------- model glue --------------------------------- #

class PallasMLP:
    def __init__(self, input_dim, hidden_dim, output_dim, n_hidden_layers,
                 k, no_nodes, key, compute_dtype=jnp.bfloat16):
        self.k = k
        self.n_hidden = n_hidden_layers
        self.no_nodes = no_nodes
        self.input_dim = input_dim
        self.hidden_dim = hidden_dim
        self.output_dim = output_dim
        self.input_size = no_nodes + (k - 1) * input_dim
        self.compute_dtype = compute_dtype

        # padded (lane-dense) dims
        self.Np = _round_up(no_nodes, _LANE)
        self.Dp = _round_up(input_dim, _LANE)
        self.Hp = _round_up(hidden_dim, _LANE)
        self.Op = _round_up(output_dim, _LANE)

        # per-generation VMEM budget and row-tile size
        itemsize = jnp.dtype(compute_dtype).itemsize
        self.vmem_cap = _tpu_vmem_capacity_bytes()
        self.vmem_limit = min(int(0.75 * self.vmem_cap), 112 * 1024 * 1024)
        self.tile_m = _choose_tile_m(self.Np, itemsize,
                                     self.vmem_limit, self.vmem_cap)

        keys = jax.random.split(key, n_hidden_layers + 2)
        w_in, b_in = _init_linear(keys[0], self.input_size, hidden_dim)
        hidden = [_init_linear(keys[1 + i], hidden_dim, hidden_dim)
                  for i in range(n_hidden_layers)]
        w_out, b_out = _init_linear(keys[-1], hidden_dim, output_dim)

        # keep unpadded f32 copies for the pure-JAX reference check
        self.w_in_full, self.b_in_full = w_in, b_in
        self.hidden_full = hidden
        self.w_out_full, self.b_out_full = w_out, b_out

        # ---- split + zero-pad weights for the fused kernels ----
        N, D = no_nodes, input_dim
        # Seed of the folded first layer: M_0 = W_S (kept f32, it is the
        # accumulator of the prologue chain).
        self.m_seed = _pad2(w_in[:N, :], self.Np, self.Hp)                # f32
        # W_j for the S^{j+1} X blocks, bf16 (MXU operands).
        self.w_in_p = [
            _pad2(w_in[N + j * D: N + (j + 1) * D, :], self.Dp, self.Hp,
                  compute_dtype)
            for j in range(k - 1)
        ]
        self.b_in = _pad2(b_in.reshape(1, -1), 1, self.Hp)                # f32

        if n_hidden_layers > 0:
            self.w_hid = jnp.stack(
                [_pad2(w, self.Hp, self.Hp, compute_dtype) for w, _ in hidden])
            self.b_hid = jnp.stack(
                [_pad2(b.reshape(1, -1), 1, self.Hp) for _, b in hidden])
        else:
            self.w_hid = None
            self.b_hid = None

        self.w_out = _pad2(w_out, self.Hp, self.Op, compute_dtype)
        self.b_out = _pad2(b_out.reshape(1, -1), 1, self.Op)              # f32

    # --- S row-tile BlockSpec (triple-buffered on v5e when worthwhile) ---
    def _s_block_spec(self, tm, n_tiles):
        Np = self.Np
        if _is_v5e() and n_tiles >= 3:
            try:
                return pl.BlockSpec((tm, Np), lambda i: (i, 0),
                                    pipeline_mode=pl.Buffered(3))
            except Exception:
                pass  # older API without pipeline_mode: fall back to default
        return pl.BlockSpec((tm, Np), lambda i: (i, 0))

    def __call__(self, S, X):
        cdt = self.compute_dtype
        Np, Dp, Hp, Op = self.Np, self.Dp, self.Hp, self.Op
        tm = self.tile_m
        n_tiles = Np // tm

        Sp = _pad2(S, Np, Np, cdt)
        Xp = _pad2(X, Np, Dp, cdt)

        cparams = pltpu.CompilerParams(
            dimension_semantics=("parallel",),
            vmem_limit_bytes=self.vmem_limit)
        s_spec = self._s_block_spec(tm, n_tiles)

        # ---- prologue: M = W_S + sum_{j=1..k-1} (S^j X) @ W_j --------------
        # k-1 row-tiled passes over S; P and M stay thin ([Np, Dp] / [Np, Hp]).
        m = self.m_seed
        p = Xp
        for j in range(self.k - 1):
            p, m = pl.pallas_call(
                _power_step_kernel,
                grid=(n_tiles,),
                in_specs=[
                    s_spec,                                        # S row tile
                    pl.BlockSpec((Np, Dp), lambda i: (0, 0)),      # P_{j-1}
                    pl.BlockSpec((Dp, Hp), lambda i: (0, 0)),      # W_j
                    pl.BlockSpec((tm, Hp), lambda i: (i, 0)),      # M_in tile
                ],
                out_specs=(
                    pl.BlockSpec((tm, Dp), lambda i: (i, 0)),      # P_j tile
                    pl.BlockSpec((tm, Hp), lambda i: (i, 0)),      # M_out tile
                ),
                out_shape=(
                    jax.ShapeDtypeStruct((Np, Dp), cdt),
                    jax.ShapeDtypeStruct((Np, Hp), jnp.float32),
                ),
                compiler_params=cparams,
            )(Sp, p, self.w_in_p[j], m)

        m_lo = m.astype(cdt)   # one tiny cast; M stays VMEM-resident below

        # ---- main fused kernel: acc = S_rowtile @ M, then the MLP stack ----
        in_specs = [
            s_spec,                                                # S row tile
            pl.BlockSpec((Np, Hp), lambda i: (0, 0)),              # M (resident)
            pl.BlockSpec((1, Hp), lambda i: (0, 0)),               # b_in
        ]
        args = [Sp, m_lo, self.b_in]
        if self.n_hidden > 0:
            in_specs += [
                pl.BlockSpec(self.w_hid.shape, lambda i: (0, 0, 0)),
                pl.BlockSpec(self.b_hid.shape, lambda i: (0, 0, 0)),
            ]
            args += [self.w_hid, self.b_hid]
        in_specs += [
            pl.BlockSpec((Hp, Op), lambda i: (0, 0)),              # W_out
            pl.BlockSpec((1, Op), lambda i: (0, 0)),               # b_out
        ]
        args += [self.w_out, self.b_out]

        kernel = functools.partial(_mlp_kernel, n_hidden=self.n_hidden,
                                   compute_dtype=cdt)
        out_p = pl.pallas_call(
            kernel,
            grid=(n_tiles,),
            in_specs=in_specs,
            out_specs=pl.BlockSpec((tm, Op), lambda i: (i, 0)),
            out_shape=jax.ShapeDtypeStruct((Np, Op), jnp.float32),
            compiler_params=cparams,
        )(*args)

        return out_p[:self.no_nodes, :self.output_dim]


def _reference_forward(model, S, X):
    """Pure-JAX f32 replica of the original PyTorch forward (validation)."""
    parts = [S]
    power = S
    for _ in range(1, model.k):
        power = power @ S
        parts.append(power @ X)
    h = jnp.concatenate(parts, axis=1)
    h = jax.nn.relu(h @ model.w_in_full + model.b_in_full)
    for w, b in model.hidden_full:
        h = jax.nn.relu(h @ w + b)
    return jax.nn.relu(h @ model.w_out_full + model.b_out_full)


# ----------------------------------- main ----------------------------------- #

if __name__ == "__main__":
    # Small synthetic sizes consistent with the module's forward.
    no_nodes = 16        # N (S is [N, N]; batch dim of the MLP)
    input_dim = 8        # feature dim of X
    hidden_dim = 32
    output_dim = 8
    n_hidden_layers = 2
    k = 3                # input_size = 16 + 2*8 = 32

    key = jax.random.PRNGKey(0)
    k_model, k_s, k_x = jax.random.split(key, 3)

    model = PallasMLP(input_dim, hidden_dim, output_dim, n_hidden_layers,
                      k, no_nodes, k_model)

    S = jax.random.uniform(k_s, (no_nodes, no_nodes), jnp.float32)
    X = jax.random.uniform(k_x, (no_nodes, input_dim), jnp.float32)

    out = jax.block_until_ready(model(S, X))
    assert out.shape == (no_nodes, output_dim)

    # Validate against a pure-JAX f32 reference of the original algorithm.
    # The kernels feed the MXU bf16 operands (f32 accumulation), so allow a
    # bf16-appropriate tolerance relative to the output scale.
    ref = _reference_forward(model, S, X)
    err = float(jnp.max(jnp.abs(out - ref)))
    scale = float(jnp.max(jnp.abs(ref))) + 1e-6
    assert err <= 3e-2 * scale, f"mismatch vs reference: {err} (scale {scale})"

    print("KERNEL_OK")
</pallas_src>

<mosaic_0001>
module attributes {stable_mosaic.version = 11 : i64} {
  func.func @_power_step_kernel(%arg0: i32, %arg1: memref<128x128xbf16, #tpu.memory_space<vmem>>, %arg2: memref<128x128xbf16, #tpu.memory_space<vmem>>, %arg3: memref<128x128xbf16, #tpu.memory_space<vmem>>, %arg4: memref<128x128xf32, #tpu.memory_space<vmem>>, %arg5: memref<128x128xbf16, #tpu.memory_space<vmem>>, %arg6: memref<128x128xf32, #tpu.memory_space<vmem>>) attributes {dimension_semantics = [#tpu.dimension_semantics<parallel>], iteration_bounds = array<i64: 1>, scalar_prefetch = 0 : i64, scratch_operands = 0 : i64, tpu.core_type = #tpu.core_type<tc>, window_params = [{transform_indices = @transform_0, window_bounds = array<i64: 128, 128>}, {pipeline_mode = #tpu.pipeline_mode<synchronous>, transform_indices = @transform_1, window_bounds = array<i64: 128, 128>}, {pipeline_mode = #tpu.pipeline_mode<synchronous>, transform_indices = @transform_2, window_bounds = array<i64: 128, 128>}, {transform_indices = @transform_3, window_bounds = array<i64: 128, 128>}, {transform_indices = @transform_4, window_bounds = array<i64: 128, 128>}, {transform_indices = @transform_5, window_bounds = array<i64: 128, 128>}]} {
    %c0 = arith.constant 0 : index
    %c0_0 = arith.constant 0 : index
    %0 = vector.load %arg1[%c0, %c0_0] : memref<128x128xbf16, #tpu.memory_space<vmem>>, vector<128x128xbf16>
    %c0_1 = arith.constant 0 : index
    %c0_2 = arith.constant 0 : index
    %1 = vector.load %arg2[%c0_1, %c0_2] : memref<128x128xbf16, #tpu.memory_space<vmem>>, vector<128x128xbf16>
    %cst = arith.constant dense<0.000000e+00> : vector<128x128xf32>
    %2 = tpu.matmul %0, %1, %cst {dimension_numbers = #tpu.dot_dimension_numbers<[1], [0], [0], [1], [0, 0, 1, 1], [], []>} : vector<128x128xbf16>, vector<128x128xbf16>, vector<128x128xf32> -> vector<128x128xf32>
    %3 = arith.truncf %2 : vector<128x128xf32> to vector<128x128xbf16>
    %c0_3 = arith.constant 0 : index
    %c0_4 = arith.constant 0 : index
    %4 = vector.load %arg5[%c0_3, %c0_4] : memref<128x128xbf16, #tpu.memory_space<vmem>>, vector<128x128xbf16>
    tpu.vector_store %arg5[%c0_3, %c0_4], %3 {strides = array<i32>} : memref<128x128xbf16, #tpu.memory_space<vmem>>, vector<128x128xbf16>,
    %c0_5 = arith.constant 0 : index
    %c0_6 = arith.constant 0 : index
    %5 = vector.load %arg4[%c0_5, %c0_6] : memref<128x128xf32, #tpu.memory_space<vmem>>, vector<128x128xf32>
    %c0_7 = arith.constant 0 : index
    %c0_8 = arith.constant 0 : index
    %6 = vector.load %arg3[%c0_7, %c0_8] : memref<128x128xbf16, #tpu.memory_space<vmem>>, vector<128x128xbf16>
    %cst_9 = arith.constant dense<0.000000e+00> : vector<128x128xf32>
    %7 = tpu.matmul %3, %6, %cst_9 {dimension_numbers = #tpu.dot_dimension_numbers<[1], [0], [0], [1], [0, 0, 1, 1], [], []>} : vector<128x128xbf16>, vector<128x128xbf16>, vector<128x128xf32> -> vector<128x128xf32>
    %8 = arith.addf %5, %7 : vector<128x128xf32>
    %c0_10 = arith.constant 0 : index
    %c0_11 = arith.constant 0 : index
    %9 = vector.load %arg6[%c0_10, %c0_11] : memref<128x128xf32, #tpu.memory_space<vmem>>, vector<128x128xf32>
    tpu.vector_store %arg6[%c0_10, %c0_11], %8 {strides = array<i32>} : memref<128x128xf32, #tpu.memory_space<vmem>>, vector<128x128xf32>,
    return
  }
  func.func @transform_0(%arg0: i32) -> (i32, i32) {
    %c0_i32 = arith.constant 0 : i32
    %c0_i32_0 = arith.constant 0 : i32
    return %arg0, %c0_i32 : i32, i32
  }
  func.func @transform_1(%arg0: i32) -> (i32, i32) {
    %c0_i32 = arith.constant 0 : i32
    %c0_i32_0 = arith.constant 0 : i32
    %c0_i32_1 = arith.constant 0 : i32
    return %c0_i32, %c0_i32_0 : i32, i32
  }
  func.func @transform_2(%arg0: i32) -> (i32, i32) {
    %c0_i32 = arith.constant 0 : i32
    %c0_i32_0 = arith.constant 0 : i32
    %c0_i32_1 = arith.constant 0 : i32
    return %c0_i32, %c0_i32_0 : i32, i32
  }
  func.func @transform_3(%arg0: i32) -> (i32, i32) {
    %c0_i32 = arith.constant 0 : i32
    %c0_i32_0 = arith.constant 0 : i32
    return %arg0, %c0_i32 : i32, i32
  }
  func.func @transform_4(%arg0: i32) -> (i32, i32) {
    %c0_i32 = arith.constant 0 : i32
    %c0_i32_0 = arith.constant 0 : i32
    return %arg0, %c0_i32 : i32, i32
  }
  func.func @transform_5(%arg0: i32) -> (i32, i32) {
    %c0_i32 = arith.constant 0 : i32
    %c0_i32_0 = arith.constant 0 : i32
    return %arg0, %c0_i32 : i32, i32
  }
}

</mosaic_0001>

<llo_original>
// kernel: tpu_custom_call.1
$region0: #{tpu_custom_call.1}
  #allocation0 [shape = 'u32[]', space=smem, size = 0x4, offset = 0x4, fixed_abs, tag = 'smem constant byte address 0x4 - core index']
  #allocation1 [shape = 'u32[144,128]{1,0:T(1,128)}', space=vmem, size = 0x12000, scoped, tag = 'internal scratch']
  %s0 = inlined_call_operand.hbm [shape: bf16[128,128], index: 0, kind: input, shape index: {}]
  %s1 = inlined_call_operand.hbm [shape: bf16[128,128], index: 1, kind: input, shape index: {}]
  %s2 = inlined_call_operand.hbm [shape: bf16[128,128], index: 2, kind: input, shape index: {}]
  %s3 = inlined_call_operand.hbm [shape: f32[128,128], index: 3, kind: input, shape index: {}]
  %s4 = inlined_call_operand.hbm [shape: bf16[128,128], index: 4, kind: output, shape index: {0}]
  %s5 = inlined_call_operand.hbm [shape: f32[128,128], index: 5, kind: output, shape index: {1}]
  %6 = xla_tuple %s4, %s5
  %s7 = sld [smem:[#allocation0]]
  $region50: #{tpu_custom_call.1} parent=0
    _
  %s9 = ssub.s32 1, %s7
  %s10 = scalar_select 0, %s9, %s7
  $region1: #{tpu_custom_call.1} parent=0
    #allocation2 [shape = 'u8[32768]{0}', space=vmem, size = 0x8000, scoped, tag = 'input window, operand 0, single buffered']
    #allocation3 [shape = 's32[1]{0}', space=sflag, size = 0x4, scoped, tag = 'scoped memory for tpu_custom_call.1']
    #allocation4 [shape = 's32[1]{0}', space=sflag, size = 0x4, scoped, tag = 'scoped memory for tpu_custom_call.1']
    #allocation5 [shape = 'u8[32768]{0}', space=vmem, size = 0x8000, scoped, tag = 'input window, operand 1, single buffered']
    #allocation6 [shape = 's32[1]{0}', space=sflag, size = 0x4, scoped, tag = 'scoped memory for tpu_custom_call.1']
    #allocation7 [shape = 'u8[32768]{0}', space=vmem, size = 0x8000, scoped, tag = 'input window, operand 2, single buffered']
    #allocation8 [shape = 'u8[65536]{0}', space=vmem, size = 0x10000, scoped, tag = 'input window, operand 3, single buffered']
    #allocation9 [shape = 's32[1]{0}', space=sflag, size = 0x4, scoped, tag = 'scoped memory for tpu_custom_call.1']
    #allocation10 [shape = 'u8[32768]{0}', space=vmem, size = 0x8000, scoped, tag = 'output window, operand 0, single buffered']
    #allocation11 [shape = 'u8[65536]{0}', space=vmem, size = 0x10000, scoped, tag = 'output window, operand 1, single buffered']
    #allocation12 [shape = 's32[1]{0}', space=sflag, size = 0x4, scoped, tag = 'scoped memory for tpu_custom_call.1']
    %11 = vsyncpa [#allocation3], 0
    %12 = vsyncpa [#allocation6], 0
    %13 = vsyncpa [#allocation9], 0
    %14 = vsyncpa [#allocation4], 0
    %15 = vsyncpa [#allocation12], 0
    // Predicated region
    $region2: #{tpu_custom_call.1} parent=1 // pred_check
      _
    $region3: #{tpu_custom_call.1} parent=1 // pred_check_branch
      %17 = sbr.rel (0) target = $region5
    $region4: #{tpu_custom_call.1} parent=1 // pred_region
      %s19 = ssub.s32 1024, 1024
      %20 = vsyncadd [#allocation3], %s19
      %s21 = sshll.u32 [#allocation2], 4
      %s22 = int_to_ptr.vmem [resolvable:$true] %s21
      %27 = dma.hbm_to_vmem [thread:$0]  %s0, 1024, %s22, [#allocation3], 64, 64, 4
    $region5: #{tpu_custom_call.1} parent=1 // pred_fallthru
      _
    // Predicated region
    $region6: #{tpu_custom_call.1} parent=1 // pred_check
      _
    $region7: #{tpu_custom_call.1} parent=1 // pred_check_branch
      %29 = sbr.rel (0) target = $region9
    $region8: #{tpu_custom_call.1} parent=1 // pred_region
      %s31 = ssub.s32 1024, 1024
      %32 = vsyncadd [#allocation6], %s31
      %s33 = sshll.u32 [#allocation5], 4
      %s34 = int_to_ptr.vmem [resolvable:$true] %s33
      %39 = dma.hbm_to_vmem [thread:$0]  %s1, 1024, %s34, [#allocation6], 64, 64, 4
    $region9: #{tpu_custom_call.1} parent=1 // pred_fallthru
      _
    // Predicated region
    $region10: #{tpu_custom_call.1} parent=1 // pred_check
      _
    $region11: #{tpu_custom_call.1} parent=1 // pred_check_branch
      %41 = sbr.rel (0) target = $region13
    $region12: #{tpu_custom_call.1} parent=1 // pred_region
      %s43 = ssub.s32 1024, 1024
      %44 = vsyncadd [#allocation6], %s43
      %s45 = sshll.u32 [#allocation7], 4
      %s46 = int_to_ptr.vmem [resolvable:$true] %s45
      %51 = dma.hbm_to_vmem [thread:$0]  %s2, 1024, %s46, [#allocation6], 64, 64, 4
    $region13: #{tpu_custom_call.1} parent=1 // pred_fallthru
      _
    // Predicated region
    $region14: #{tpu_custom_call.1} parent=1 // pred_check
      _
    $region15: #{tpu_custom_call.1} parent=1 // pred_check_branch
      %53 = sbr.rel (0) target = $region17
    $region16: #{tpu_custom_call.1} parent=1 // pred_region
      %s55 = ssub.s32 2048, 2048
      %56 = vsyncadd [#allocation9], %s55
      %s57 = sshll.u32 [#allocation8], 4
      %s58 = int_to_ptr.vmem [resolvable:$true] %s57
      %63 = dma.hbm_to_vmem [thread:$0]  %s3, 2048, %s58, [#allocation9], 128, 128, 8
    $region17: #{tpu_custom_call.1} parent=1 // pred_fallthru
      _
    // Predicated region
    $region18: #{tpu_custom_call.1} parent=1 // pred_check
      _
    $region19: #{tpu_custom_call.1} parent=1 // pred_check_branch
      %65 = sbr.rel (0) target = $region21
    $region20: #{tpu_custom_call.1} parent=1 // pred_region
      %66 = dma.done [#allocation3], 1024
    $region21: #{tpu_custom_call.1} parent=1 // pred_fallthru
      _
    // Predicated region
    $region22: #{tpu_custom_call.1} parent=1 // pred_check
      _
    $region23: #{tpu_custom_call.1} parent=1 // pred_check_branch
      %68 = sbr.rel (0) target = $region25
    $region24: #{tpu_custom_call.1} parent=1 // pred_region
      %69 = dma.done [#allocation6], 1024
    $region25: #{tpu_custom_call.1} parent=1 // pred_fallthru
      _
    // Predicated region
    $region26: #{tpu_custom_call.1} parent=1 // pred_check
      _
    $region27: #{tpu_custom_call.1} parent=1 // pred_check_branch
      %71 = sbr.rel (0) target = $region29
    $region28: #{tpu_custom_call.1} parent=1 // pred_region
      %72 = dma.done [#allocation6], 1024
    $region29: #{tpu_custom_call.1} parent=1 // pred_fallthru
      _
    // Predicated region
    $region30: #{tpu_custom_call.1} parent=1 // pred_check
      _
    $region31: #{tpu_custom_call.1} parent=1 // pred_check_branch
      %74 = sbr.rel (0) target = $region33
    $region32: #{tpu_custom_call.1} parent=1 // pred_region
      %75 = dma.done [#allocation9], 2048
    $region33: #{tpu_custom_call.1} parent=1 // pred_fallthru
      _
    %v77 = vld [vmem:[#allocation2] sm:$0xf]
    %v78 = vld [vmem:[#allocation2 + $0x4] sm:$0xf]
    %v79 = vld [vmem:[#allocation2 + $0x8] sm:$0xf]
    %v80 = vld [vmem:[#allocation2 + $0xc] sm:$0xf]
    %v81 = vld [vmem:[#allocation2 + $0x10] sm:$0xf]
    %v82 = vld [vmem:[#allocation2 + $0x14] sm:$0xf]
    %v83 = vld [vmem:[#allocation2 + $0x18] sm:$0xf]
    %v84 = vld [vmem:[#allocation2 + $0x1c] sm:$0xf]
    %v85 = vld [vmem:[#allocation2 + $0x20] sm:$0xf]
    %v86 = vld [vmem:[#allocation2 + $0x24] sm:$0xf]
    %v87 = vld [vmem:[#allocation2 + $0x28] sm:$0xf]
    %v88 = vld [vmem:[#allocation2 + $0x2c] sm:$0xf]
    %v89 = vld [vmem:[#allocation2 + $0x30] sm:$0xf]
    %v90 = vld [vmem:[#allocation2 + $0x34] sm:$0xf]
    %v91 = vld [vmem:[#allocation2 + $0x38] sm:$0xf]
    %v92 = vld [vmem:[#allocation2 + $0x3c] sm:$0xf]
    %v93 = vld [vmem:[#allocation5] sm:$0xf]
    %v94 = vld [vmem:[#allocation5 + $0x4] sm:$0xf]
    %v95 = vld [vmem:[#allocation5 + $0x8] sm:$0xf]
    %v96 = vld [vmem:[#allocation5 + $0xc] sm:$0xf]
    %v97 = vld [vmem:[#allocation5 + $0x10] sm:$0xf]
    %v98 = vld [vmem:[#allocation5 + $0x14] sm:$0xf]
    %v99 = vld [vmem:[#allocation5 + $0x18] sm:$0xf]
    %v100 = vld [vmem:[#allocation5 + $0x1c] sm:$0xf]
    %v101 = vld [vmem:[#allocation5 + $0x20] sm:$0xf]
    %v102 = vld [vmem:[#allocation5 + $0x24] sm:$0xf]
    %v103 = vld [vmem:[#allocation5 + $0x28] sm:$0xf]
    %v104 = vld [vmem:[#allocation5 + $0x2c] sm:$0xf]
    %v105 = vld [vmem:[#allocation5 + $0x30] sm:$0xf]
    %v106 = vld [vmem:[#allocation5 + $0x34] sm:$0xf]
    %v107 = vld [vmem:[#allocation5 + $0x38] sm:$0xf]
    %v108 = vld [vmem:[#allocation5 + $0x3c] sm:$0xf]
    %v125 = vunpack.c.l.b16 %v77
    %v126 = vunpack.c.l.b16 %v78
    %v127 = vunpack.c.l.b16 %v79
    %v128 = vunpack.c.l.b16 %v80
    %v129 = vunpack.c.l.b16 %v81
    %v130 = vunpack.c.l.b16 %v82
    %v131 = vunpack.c.l.b16 %v83
    %v132 = vunpack.c.l.b16 %v84
    %v133 = vunpack.c.l.b16 %v85
    %v134 = vunpack.c.l.b16 %v86
    %v135 = vunpack.c.l.b16 %v87
    %v136 = vunpack.c.l.b16 %v88
    %v137 = vunpack.c.l.b16 %v89
    %v138 = vunpack.c.l.b16 %v90
    %v139 = vunpack.c.l.b16 %v91
    %v140 = vunpack.c.l.b16 %v92
    %v141 = vpack.c.b16 %v126, %v125
    %v142 = vpack.c.b16 %v128, %v127
    %v143 = vpack.c.b16 %v130, %v129
    %v144 = vpack.c.b16 %v132, %v131
    %v145 = vpack.c.b16 %v134, %v133
    %v146 = vpack.c.b16 %v136, %v135
    %v147 = vpack.c.b16 %v138, %v137
    %v148 = vpack.c.b16 %v140, %v139
    %v173 = vunpack.c.l.b16 %v93
    %v174 = vunpack.c.l.b16 %v94
    %v175 = vunpack.c.l.b16 %v95
    %v176 = vunpack.c.l.b16 %v96
    %v177 = vunpack.c.l.b16 %v97
    %v178 = vunpack.c.l.b16 %v98
    %v179 = vunpack.c.l.b16 %v99
    %v180 = vunpack.c.l.b16 %v100
    %v181 = vunpack.c.l.b16 %v101
    %v182 = vunpack.c.l.b16 %v102
    %v183 = vunpack.c.l.b16 %v103
    %v184 = vunpack.c.l.b16 %v104
    %v185 = vunpack.c.l.b16 %v105
    %v186 = vunpack.c.l.b16 %v106
    %v187 = vunpack.c.l.b16 %v107
    %v188 = vunpack.c.l.b16 %v108
    %v189 = vpack.c.b16 %v174, %v173
    %v190 = vpack.c.b16 %v176, %v175
    %v191 = vpack.c.b16 %v178, %v177
    %v192 = vpack.c.b16 %v180, %v179
    %v193 = vpack.c.b16 %v182, %v181
    %v194 = vpack.c.b16 %v184, %v183
    %v195 = vpack.c.b16 %v186, %v185
    %v196 = vpack.c.b16 %v188, %v187
    %205 = vmatprep.subr.bf16.mxu0 0
    %206 = vmatpush1.bf16.msra.mxu0 %v189
    %207 = vmatprep.subr.bf16.mxu0 0
    %208 = vmatpush1.bf16.msra.mxu0 %v190
    %209 = vmatprep.subr.bf16.mxu0 0
    %210 = vmatpush1.bf16.msra.mxu0 %v191
    %211 = vmatprep.subr.bf16.mxu0 0
    %212 = vmatpush1.bf16.msra.mxu0 %v192
    %213 = vmatprep.subr.bf16.mxu0 0
    %214 = vmatpush1.bf16.msra.mxu0 %v193
    %215 = vmatprep.subr.bf16.mxu0 0
    %216 = vmatpush1.bf16.msra.mxu0 %v194
    %217 = vmatprep.subr.bf16.mxu0 0
    %218 = vmatpush1.bf16.msra.mxu0 %v195
    %219 = vmatprep.subr.bf16.mxu0 0
    %220 = vmatpush1.bf16.msra.mxu0 %v196
    %221 = vmatprep.subr.bf16.mxu0 0
    %222 = vmatpush1.bf16.msra.mxu0 0
    %223 = vmatprep.subr.bf16.mxu0 0
    %224 = vmatpush1.bf16.msra.mxu0 0
    %225 = vmatprep.subr.bf16.mxu0 0
    %226 = vmatpush1.bf16.msra.mxu0 0
    %227 = vmatprep.subr.bf16.mxu0 0
    %228 = vmatpush1.bf16.msra.mxu0 0
    %229 = vmatprep.subr.bf16.mxu0 0
    %230 = vmatpush1.bf16.msra.mxu0 0
    %231 = vmatprep.subr.bf16.mxu0 0
    %232 = vmatpush1.bf16.msra.mxu0 0
    %233 = vmatprep.subr.bf16.mxu0 0
    %234 = vmatpush1.bf16.msra.mxu0 0
    %235 = vmatprep.subr.bf16.mxu0 0
    %236 = vmatpush1.bf16.msra.mxu0 0
    %237 = vmatprep.mubr.bf16.mxu0 0
    %238 = vmatmul.mubr.bf16.gmra.mrb[0].mxu0 %v141
    %v239 = vpop.f32.mrb[0].mxu0
    %v240 = vadd.f32 0.0, %v239
    %v241 = vpop.f32.mrb[0].mxu0
    %v242 = vpop.f32.mrb[0].mxu0
    %v243 = vadd.f32 0.0, %v242
    %v244 = vpop.f32.mrb[0].mxu0
    %245 = vmatprep.mubr.bf16.mxu0 0
    %246 = vmatmul.mubr.bf16.gmra.mrb[0].mxu0 %v142
    %v247 = vpop.f32.mrb[0].mxu0
    %v248 = vadd.f32 0.0, %v247
    %v249 = vpop.f32.mrb[0].mxu0
    %v250 = vpop.f32.mrb[0].mxu0
    %v251 = vadd.f32 0.0, %v250
    %v252 = vpop.f32.mrb[0].mxu0
    %253 = vmatprep.mubr.bf16.mxu0 0
    %254 = vmatmul.mubr.bf16.gmra.mrb[0].mxu0 %v143
    %v255 = vpop.f32.mrb[0].mxu0
    %v256 = vadd.f32 0.0, %v255
    %v257 = vpop.f32.mrb[0].mxu0
    %v258 = vpop.f32.mrb[0].mxu0
    %v259 = vadd.f32 0.0, %v258
    %v260 = vpop.f32.mrb[0].mxu0
    %261 = vmatprep.mubr.bf16.mxu0 0
    %262 = vmatmul.mubr.bf16.gmra.mrb[0].mxu0 %v144
    %v263 = vpop.f32.mrb[0].mxu0
    %v264 = vadd.f32 0.0, %v263
    %v265 = vpop.f32.mrb[0].mxu0
    %v266 = vpop.f32.mrb[0].mxu0
    %v267 = vadd.f32 0.0, %v266
    %v268 = vpop.f32.mrb[0].mxu0
    %269 = vmatprep.mubr.bf16.mxu0 0
    %270 = vmatmul.mubr.bf16.gmra.mrb[0].mxu0 %v145
    %v271 = vpop.f32.mrb[0].mxu0
    %v272 = vadd.f32 0.0, %v271
    %v273 = vpop.f32.mrb[0].mxu0
    %v274 = vpop.f32.mrb[0].mxu0
    %v275 = vadd.f32 0.0, %v274
    %v276 = vpop.f32.mrb[0].mxu0
    %277 = vmatprep.mubr.bf16.mxu0 0
    %278 = vmatmul.mubr.bf16.gmra.mrb[0].mxu0 %v146
    %v279 = vpop.f32.mrb[0].mxu0
    %v280 = vadd.f32 0.0, %v279
    %v281 = vpop.f32.mrb[0].mxu0
    %v282 = vpop.f32.mrb[0].mxu0
    %v283 = vadd.f32 0.0, %v282
    %v284 = vpop.f32.mrb[0].mxu0
    %285 = vmatprep.mubr.bf16.mxu0 0
    %286 = vmatmul.mubr.bf16.gmra.mrb[0].mxu0 %v147
    %v287 = vpop.f32.mrb[0].mxu0
    %v288 = vadd.f32 0.0, %v287
    %v289 = vpop.f32.mrb[0].mxu0
    %v290 = vpop.f32.mrb[0].mxu0
    %v291 = vadd.f32 0.0, %v290
    %v292 = vpop.f32.mrb[0].mxu0
    %293 = vmatprep.mubr.bf16.mxu0 0
    %294 = vmatmul.mubr.bf16.gmra.mrb[0].mxu0 %v148
    %v295 = vpop.f32.mrb[0].mxu0
    %v296 = vadd.f32 0.0, %v295
    %v297 = vpop.f32.mrb[0].mxu0
    %v298 = vpop.f32.mrb[0].mxu0
    %v299 = vadd.f32 0.0, %v298
    %v300 = vpop.f32.mrb[0].mxu0
    %301 = vdwg.mxu0
    %v302 = vpack.c.bf16 %v243, %v240
    %v303 = vpack.c.bf16 %v251, %v248
    %v304 = vpack.c.bf16 %v259, %v256
    %v305 = vpack.c.bf16 %v267, %v264
    %v306 = vpack.c.bf16 %v275, %v272
    %v307 = vpack.c.bf16 %v283, %v280
    %v308 = vpack.c.bf16 %v291, %v288
    %v309 = vpack.c.bf16 %v299, %v296
    %v318 = vunpack.c.l.b16 %v302
    %v319 = vunpack.c.h.b16 %v302
    %v320 = vunpack.c.l.b16 %v303
    %v321 = vunpack.c.h.b16 %v303
    %v322 = vunpack.c.l.b16 %v304
    %v323 = vunpack.c.h.b16 %v304
    %v324 = vunpack.c.l.b16 %v305
    %v325 = vunpack.c.h.b16 %v305
    %v326 = vunpack.c.l.b16 %v306
    %v327 = vunpack.c.h.b16 %v306
    %v328 = vunpack.c.l.b16 %v307
    %v329 = vunpack.c.h.b16 %v307
    %v330 = vunpack.c.l.b16 %v308
    %v331 = vunpack.c.h.b16 %v308
    %v332 = vunpack.c.l.b16 %v309
    %v333 = vunpack.c.h.b16 %v309
    %v334 = vpack.c.b16 %v318, %v318
    %v335 = vpack.c.b16 %v319, %v319
    %v336 = vpack.c.b16 %v320, %v320
    %v337 = vpack.c.b16 %v321, %v321
    %v338 = vpack.c.b16 %v322, %v322
    %v339 = vpack.c.b16 %v323, %v323
    %v340 = vpack.c.b16 %v324, %v324
    %v341 = vpack.c.b16 %v325, %v325
    %v342 = vpack.c.b16 %v326, %v326
    %v343 = vpack.c.b16 %v327, %v327
    %v344 = vpack.c.b16 %v328, %v328
    %v345 = vpack.c.b16 %v329, %v329
    %v346 = vpack.c.b16 %v330, %v330
    %v347 = vpack.c.b16 %v331, %v331
    %v348 = vpack.c.b16 %v332, %v332
    %v349 = vpack.c.b16 %v333, %v333
    %366 = vst [vmem:[#allocation10] sm:$0xf] %v334
    %367 = vst [vmem:[#allocation10 + $0x4] sm:$0xf] %v335
    %368 = vst [vmem:[#allocation10 + $0x8] sm:$0xf] %v336
    %369 = vst [vmem:[#allocation10 + $0xc] sm:$0xf] %v337
    %370 = vst [vmem:[#allocation10 + $0x10] sm:$0xf] %v338
    %371 = vst [vmem:[#allocation10 + $0x14] sm:$0xf] %v339
    %372 = vst [vmem:[#allocation10 + $0x18] sm:$0xf] %v340
    %373 = vst [vmem:[#allocation10 + $0x1c] sm:$0xf] %v341
    %374 = vst [vmem:[#allocation10 + $0x20] sm:$0xf] %v342
    %375 = vst [vmem:[#allocation10 + $0x24] sm:$0xf] %v343
    %376 = vst [vmem:[#allocation10 + $0x28] sm:$0xf] %v344
    %377 = vst [vmem:[#allocation10 + $0x2c] sm:$0xf] %v345
    %378 = vst [vmem:[#allocation10 + $0x30] sm:$0xf] %v346
    %379 = vst [vmem:[#allocation10 + $0x34] sm:$0xf] %v347
    %380 = vst [vmem:[#allocation10 + $0x38] sm:$0xf] %v348
    %381 = vst [vmem:[#allocation10 + $0x3c] sm:$0xf] %v349
    %v382 = vld [vmem:[#allocation8] sm:$0xff]
    %v383 = vld [vmem:[#allocation8 + $0x8] sm:$0xff]
    %v384 = vld [vmem:[#allocation8 + $0x10] sm:$0xff]
    %v385 = vld [vmem:[#allocation8 + $0x18] sm:$0xff]
    %v386 = vld [vmem:[#allocation8 + $0x20] sm:$0xff]
    %v387 = vld [vmem:[#allocation8 + $0x28] sm:$0xff]
    %v388 = vld [vmem:[#allocation8 + $0x30] sm:$0xff]
    %v389 = vld [vmem:[#allocation8 + $0x38] sm:$0xff]
    %v390 = vld [vmem:[#allocation8 + $0x40] sm:$0xff]
    %v391 = vld [vmem:[#allocation8 + $0x48] sm:$0xff]
    %v392 = vld [vmem:[#allocation8 + $0x50] sm:$0xff]
    %v393 = vld [vmem:[#allocation8 + $0x58] sm:$0xff]
    %v394 = vld [vmem:[#allocation8 + $0x60] sm:$0xff]
    %v395 = vld [vmem:[#allocation8 + $0x68] sm:$0xff]
    %v396 = vld [vmem:[#allocation8 + $0x70] sm:$0xff]
    %v397 = vld [vmem:[#allocation8 + $0x78] sm:$0xff]
    %v398 = vld [vmem:[#allocation7] sm:$0xf]
    %v399 = vld [vmem:[#allocation7 + $0x4] sm:$0xf]
    %v400 = vld [vmem:[#allocation7 + $0x8] sm:$0xf]
    %v401 = vld [vmem:[#allocation7 + $0xc] sm:$0xf]
    %v402 = vld [vmem:[#allocation7 + $0x10] sm:$0xf]
    %v403 = vld [vmem:[#allocation7 + $0x14] sm:$0xf]
    %v404 = vld [vmem:[#allocation7 + $0x18] sm:$0xf]
    %v405 = vld [vmem:[#allocation7 + $0x1c] sm:$0xf]
    %v406 = vld [vmem:[#allocation7 + $0x20] sm:$0xf]
    %v407 = vld [vmem:[#allocation7 + $0x24] sm:$0xf]
    %v408 = vld [vmem:[#allocation7 + $0x28] sm:$0xf]
    %v409 = vld [vmem:[#allocation7 + $0x2c] sm:$0xf]
    %v410 = vld [vmem:[#allocation7 + $0x30] sm:$0xf]
    %v411 = vld [vmem:[#allocation7 + $0x34] sm:$0xf]
    %v412 = vld [vmem:[#allocation7 + $0x38] sm:$0xf]
    %v413 = vld [vmem:[#allocation7 + $0x3c] sm:$0xf]
    %v430 = vunpack.c.l.b16 %v398
    %v431 = vunpack.c.l.b16 %v399
    %v432 = vunpack.c.l.b16 %v400
    %v433 = vunpack.c.l.b16 %v401
    %v434 = vunpack.c.l.b16 %v402
    %v435 = vunpack.c.l.b16 %v403
    %v436 = vunpack.c.l.b16 %v404
    %v437 = vunpack.c.l.b16 %v405
    %v438 = vunpack.c.l.b16 %v406
    %v439 = vunpack.c.l.b16 %v407
    %v440 = vunpack.c.l.b16 %v408
    %v441 = vunpack.c.l.b16 %v409
    %v442 = vunpack.c.l.b16 %v410
    %v443 = vunpack.c.l.b16 %v411
    %v444 = vunpack.c.l.b16 %v412
    %v445 = vunpack.c.l.b16 %v413
    %v446 = vpack.c.b16 %v431, %v430
    %v447 = vpack.c.b16 %v433, %v432
    %v448 = vpack.c.b16 %v435, %v434
    %v449 = vpack.c.b16 %v437, %v436
    %v450 = vpack.c.b16 %v439, %v438
    %v451 = vpack.c.b16 %v441, %v440
    %v452 = vpack.c.b16 %v443, %v442
    %v453 = vpack.c.b16 %v445, %v444
    %462 = vmatprep.subr.bf16.mxu0 0
    %463 = vmatpush1.bf16.msra.mxu0 %v446
    %464 = vmatprep.subr.bf16.mxu0 0
    %465 = vmatpush1.bf16.msra.mxu0 %v447
    %466 = vmatprep.subr.bf16.mxu0 0
    %467 = vmatpush1.bf16.msra.mxu0 %v448
    %468 = vmatprep.subr.bf16.mxu0 0
    %469 = vmatpush1.bf16.msra.mxu0 %v449
    %470 = vmatprep.subr.bf16.mxu0 0
    %471 = vmatpush1.bf16.msra.mxu0 %v450
    %472 = vmatprep.subr.bf16.mxu0 0
    %473 = vmatpush1.bf16.msra.mxu0 %v451
    %474 = vmatprep.subr.bf16.mxu0 0
    %475 = vmatpush1.bf16.msra.mxu0 %v452
    %476 = vmatprep.subr.bf16.mxu0 0
    %477 = vmatpush1.bf16.msra.mxu0 %v453
    %478 = vmatprep.subr.bf16.mxu0 0
    %479 = vmatpush1.bf16.msra.mxu0 0
    %480 = vmatprep.subr.bf16.mxu0 0
    %481 = vmatpush1.bf16.msra.mxu0 0
    %482 = vmatprep.subr.bf16.mxu0 0
    %483 = vmatpush1.bf16.msra.mxu0 0
    %484 = vmatprep.subr.bf16.mxu0 0
    %485 = vmatpush1.bf16.msra.mxu0 0
    %486 = vmatprep.subr.bf16.mxu0 0
    %487 = vmatpush1.bf16.msra.mxu0 0
    %488 = vmatprep.subr.bf16.mxu0 0
    %489 = vmatpush1.bf16.msra.mxu0 0
    %490 = vmatprep.subr.bf16.mxu0 0
    %491 = vmatpush1.bf16.msra.mxu0 0
    %492 = vmatprep.subr.bf16.mxu0 0
    %493 = vmatpush1.bf16.msra.mxu0 0
    %494 = vmatprep.mubr.bf16.mxu0 0
    %495 = vmatmul.mubr.bf16.gmra.mrb[0].mxu0 %v302
    %v496 = vpop.f32.mrb[0].mxu0
    %v497 = vadd.f32 0.0, %v496
    %v498 = vpop.f32.mrb[0].mxu0
    %v499 = vpop.f32.mrb[0].mxu0
    %v500 = vadd.f32 0.0, %v499
    %v501 = vpop.f32.mrb[0].mxu0
    %502 = vmatprep.mubr.bf16.mxu0 0
    %503 = vmatmul.mubr.bf16.gmra.mrb[0].mxu0 %v303
    %v504 = vpop.f32.mrb[0].mxu0
    %v505 = vadd.f32 0.0, %v504
    %v506 = vpop.f32.mrb[0].mxu0
    %v507 = vpop.f32.mrb[0].mxu0
    %v508 = vadd.f32 0.0, %v507
    %v509 = vpop.f32.mrb[0].mxu0
    %510 = vmatprep.mubr.bf16.mxu0 0
    %511 = vmatmul.mubr.bf16.gmra.mrb[0].mxu0 %v304
    %v512 = vpop.f32.mrb[0].mxu0
    %v513 = vadd.f32 0.0, %v512
    %v514 = vpop.f32.mrb[0].mxu0
    %v515 = vpop.f32.mrb[0].mxu0
    %v516 = vadd.f32 0.0, %v515
    %v517 = vpop.f32.mrb[0].mxu0
    %518 = vmatprep.mubr.bf16.mxu0 0
    %519 = vmatmul.mubr.bf16.gmra.mrb[0].mxu0 %v305
    %v520 = vpop.f32.mrb[0].mxu0
    %v521 = vadd.f32 0.0, %v520
    %v522 = vpop.f32.mrb[0].mxu0
    %v523 = vpop.f32.mrb[0].mxu0
    %v524 = vadd.f32 0.0, %v523
    %v525 = vpop.f32.mrb[0].mxu0
    %526 = vmatprep.mubr.bf16.mxu0 0
    %527 = vmatmul.mubr.bf16.gmra.mrb[0].mxu0 %v306
    %v528 = vpop.f32.mrb[0].mxu0
    %v529 = vadd.f32 0.0, %v528
    %v530 = vpop.f32.mrb[0].mxu0
    %v531 = vpop.f32.mrb[0].mxu0
    %v532 = vadd.f32 0.0, %v531
    %v533 = vpop.f32.mrb[0].mxu0
    %534 = vmatprep.mubr.bf16.mxu0 0
    %535 = vmatmul.mubr.bf16.gmra.mrb[0].mxu0 %v307
    %v536 = vpop.f32.mrb[0].mxu0
    %v537 = vadd.f32 0.0, %v536
    %v538 = vpop.f32.mrb[0].mxu0
    %v539 = vpop.f32.mrb[0].mxu0
    %v540 = vadd.f32 0.0, %v539
    %v541 = vpop.f32.mrb[0].mxu0
    %542 = vmatprep.mubr.bf16.mxu0 0
    %543 = vmatmul.mubr.bf16.gmra.mrb[0].mxu0 %v308
    %v544 = vpop.f32.mrb[0].mxu0
    %v545 = vadd.f32 0.0, %v544
    %v546 = vpop.f32.mrb[0].mxu0
    %v547 = vpop.f32.mrb[0].mxu0
    %v548 = vadd.f32 0.0, %v547
    %v549 = vpop.f32.mrb[0].mxu0
    %550 = vmatprep.mubr.bf16.mxu0 0
    %551 = vmatmul.mubr.bf16.gmra.mrb[0].mxu0 %v309
    %v552 = vpop.f32.mrb[0].mxu0
    %v553 = vadd.f32 0.0, %v552
    %v554 = vpop.f32.mrb[0].mxu0
    %v555 = vpop.f32.mrb[0].mxu0
    %v556 = vadd.f32 0.0, %v555
    %v557 = vpop.f32.mrb[0].mxu0
    %558 = vdwg.mxu0
    %v559 = vadd.f32 %v382, %v497
    %v560 = vadd.f32 %v383, %v500
    %v561 = vadd.f32 %v384, %v505
    %v562 = vadd.f32 %v385, %v508
    %v563 = vadd.f32 %v386, %v513
    %v564 = vadd.f32 %v387, %v516
    %v565 = vadd.f32 %v388, %v521
    %v566 = vadd.f32 %v389, %v524
    %v567 = vadd.f32 %v390, %v529
    %v568 = vadd.f32 %v391, %v532
    %v569 = vadd.f32 %v392, %v537
    %v570 = vadd.f32 %v393, %v540
    %v571 = vadd.f32 %v394, %v545
    %v572 = vadd.f32 %v395, %v548
    %v573 = vadd.f32 %v396, %v553
    %v574 = vadd.f32 %v397, %v556
    %575 = vst [vmem:[#allocation11] sm:$0xff] %v559
    %576 = vst [vmem:[#allocation11 + $0x8] sm:$0xff] %v560
    %577 = vst [vmem:[#allocation11 + $0x10] sm:$0xff] %v561
    %578 = vst [vmem:[#allocation11 + $0x18] sm:$0xff] %v562
    %579 = vst [vmem:[#allocation11 + $0x20] sm:$0xff] %v563
    %580 = vst [vmem:[#allocation11 + $0x28] sm:$0xff] %v564
    %581 = vst [vmem:[#allocation11 + $0x30] sm:$0xff] %v565
    %582 = vst [vmem:[#allocation11 + $0x38] sm:$0xff] %v566
    %583 = vst [vmem:[#allocation11 + $0x40] sm:$0xff] %v567
    %584 = vst [vmem:[#allocation11 + $0x48] sm:$0xff] %v568
    %585 = vst [vmem:[#allocation11 + $0x50] sm:$0xff] %v569
    %586 = vst [vmem:[#allocation11 + $0x58] sm:$0xff] %v570
    %587 = vst [vmem:[#allocation11 + $0x60] sm:$0xff] %v571
    %588 = vst [vmem:[#allocation11 + $0x68] sm:$0xff] %v572
    %589 = vst [vmem:[#allocation11 + $0x70] sm:$0xff] %v573
    %590 = vst [vmem:[#allocation11 + $0x78] sm:$0xff] %v574
    // Predicated region
    $region34: #{tpu_custom_call.1} parent=1 // pred_check
      _
    $region35: #{tpu_custom_call.1} parent=1 // pred_check_branch
      %592 = sbr.rel (0) target = $region37
    $region36: #{tpu_custom_call.1} parent=1 // pred_region
      %s594 = ssub.s32 1024, 1024
      %595 = vsyncadd [#allocation4], %s594
      %s596 = sshll.u32 [#allocation10], 4
      %s597 = int_to_ptr.vmem [resolvable:$true] %s596
      %602 = dma.vmem_to_hbm [thread:$0]  %s597, 1024, %s4, [#allocation4], 64, 64, 4
    $region37: #{tpu_custom_call.1} parent=1 // pred_fallthru
      _
    // Predicated region
    $region38: #{tpu_custom_call.1} parent=1 // pred_check
      _
    $region39: #{tpu_custom_call.1} parent=1 // pred_check_branch
      %604 = sbr.rel (0) target = $region41
    $region40: #{tpu_custom_call.1} parent=1 // pred_region
      %s606 = ssub.s32 2048, 2048
      %607 = vsyncadd [#allocation12], %s606
      %s608 = sshll.u32 [#allocation11], 4
      %s609 = int_to_ptr.vmem [resolvable:$true] %s608
      %614 = dma.vmem_to_hbm [thread:$0]  %s609, 2048, %s5, [#allocation12], 128, 128, 8
    $region41: #{tpu_custom_call.1} parent=1 // pred_fallthru
      _
    // Predicated region
    $region42: #{tpu_custom_call.1} parent=1 // pred_check
      _
    $region43: #{tpu_custom_call.1} parent=1 // pred_check_branch
      %616 = sbr.rel (0) target = $region45
    $region44: #{tpu_custom_call.1} parent=1 // pred_region
      %617 = dma.done [#allocation4], 1024
    $region45: #{tpu_custom_call.1} parent=1 // pred_fallthru
      _
    // Predicated region
    $region46: #{tpu_custom_call.1} parent=1 // pred_check
      _
    $region47: #{tpu_custom_call.1} parent=1 // pred_check_branch
      %619 = sbr.rel (0) target = $region49
    $region48: #{tpu_custom_call.1} parent=1 // pred_region
      %620 = dma.done [#allocation12], 2048
    $region49: #{tpu_custom_call.1} parent=1 // pred_fallthru
      _
    %621 = vsyncpa [#allocation3], 1
    %622 = vsyncpa [#allocation6], 1
    %623 = vsyncpa [#allocation9], 1
    %624 = vsyncpa [#allocation4], 1
    %625 = vsyncpa [#allocation12], 1

</llo_original>
